<compile_context>
chip_gen: v5e
topology: v5e:2x2
jax: 0.10.0
libtpu: 0.0.40
codegen_flags: <defaults>
</compile_context>

<pallas_src>
import functools

import jax
import jax.numpy as jnp
import numpy as np
from jax.experimental import pallas as pl
from jax.experimental.pallas import tpu as pltpu


def _deformer_kernel(q_ref, k_ref, ws_ref, waq_ref, wak_ref, bs_ref, ba_ref,
                     selt_ref, o_ref, *, inv_h):
    """One row-tile of the fused offsets/attention/reduction.

    q_ref:    (TM, D)      f32   query rows (cast to bf16 in VMEM)
    k_ref:    (TM, D)      f32   key rows
    ws_ref:   (D, 3*HP)    bf16  sampling_offsets weight, channel-major columns
    waq_ref:  (D, 3*HP)    bf16  attn weight, q half, replicated per channel block
    wak_ref:  (D, 3*HP)    bf16  attn weight, k half, replicated per channel block
    bs_ref:   (1, 3*HP)    f32   sampling_offsets bias (channel-major)
    ba_ref:   (1, 3*HP)    f32   attn bias, replicated per channel block
    selt_ref: (3, 3*HP)    bf16  0/1 block-diagonal channel selector (unscaled)
    o_ref:    (3, TM)      f32   transposed flow tile (lane-dense store)
    """
    q_bf = q_ref[...].astype(jnp.bfloat16)
    k_bf = k_ref[...].astype(jnp.bfloat16)

    # offsets, channel-major: s[:, c*HP + (h*P + p)] = offsets[:, h, p, c]
    s = jnp.dot(q_bf, ws_ref[...], preferred_element_type=jnp.float32) + bs_ref[...]
    # attention logits, already broadcast over the 3 channel blocks by the
    # replicated weight columns (MXU does the broadcast; no lane shuffles here).
    a3 = (jnp.dot(q_bf, waq_ref[...], preferred_element_type=jnp.float32)
          + jnp.dot(k_bf, wak_ref[...], preferred_element_type=jnp.float32)
          + ba_ref[...])

    # per-point products, bf16 so the selector contraction is a single MXU pass
    p = (s * a3).astype(jnp.bfloat16)                      # (TM, 3*HP)

    # flow^T[c, m] = sum_{h,p'} offsets[m,h,p',c] * attn[m,h,p']
    # rhs-transposed contraction against the 0/1 selector -> (3, TM), lane-dense.
    flow_t = jax.lax.dot_general(
        selt_ref[...], p,
        dimension_numbers=(((1,), (1,)), ((), ())),
        preferred_element_type=jnp.float32)
    # exact 1/n_head head-mean applied to the f32 result (selector stays 0/1).
    o_ref[...] = (flow_t * inv_h).astype(o_ref.dtype)


def deformer_layer_pallas(q, k, params, *, n_head, n_point, tm=1024):
    """q, k: (B, L, d_model) float32. Returns (B, L, 3) float32."""
    B, L, D = q.shape
    N = B * L
    hp = n_head * n_point

    ws, waq3, wak3, bs, ba3, selt = params  # packed by make_params

    # Row tile: multiple of 128 (lane-dense (3, tm) output blocks).  Shrink for
    # small problems, but keep >=2 grid steps when N allows so the "parallel"
    # grid axis can shard across both v7x TensorCores.
    tm = max(128, (tm // 128) * 128)
    tm = min(tm, max(128, pl.cdiv(N, 2 * 128) * 128))
    grid = pl.cdiv(N, tm)

    # Plain f32 views straight from HBM -- no astype / pad round-trips.
    qf = q.reshape(N, D)
    kf = k.reshape(N, D)

    kernel = functools.partial(_deformer_kernel, inv_h=1.0 / float(n_head))

    # Advisory cost estimate: three skinny matmuls + products + selector reduce.
    weight_bytes = 3 * D * 3 * hp * 2 + 2 * 3 * hp * 4 + 3 * 3 * hp * 2
    bytes_accessed = 2 * N * D * qf.dtype.itemsize + 3 * N * 4 + weight_bytes
    flops = N * (3 * 2 * D * 3 * hp + 3 * hp + 2 * 3 * 3 * hp)

    # VMEM budget: double-buffered f32 q/k tiles + output tiles + f32/bf16
    # intermediates (s, a3, p) + resident weights; generous headroom, capped well
    # below v7x's 64 MiB physical VMEM.
    est_vmem = (2 * 2 * tm * D * 4          # q, k double-buffered
                + 2 * 3 * tm * 4            # output double-buffered
                + 6 * tm * 3 * hp * 4       # intermediates
                + 4 * weight_bytes)
    vmem_limit = int(min(48 * 1024 * 1024, max(16 * 1024 * 1024, 4 * est_vmem)))

    out_t = pl.pallas_call(
        kernel,
        out_shape=jax.ShapeDtypeStruct((3, N), jnp.float32),
        grid_spec=pltpu.PrefetchScalarGridSpec(
            num_scalar_prefetch=0,
            grid=(grid,),
            in_specs=[
                pl.BlockSpec((tm, D), lambda i: (i, 0)),       # q rows (f32)
                pl.BlockSpec((tm, D), lambda i: (i, 0)),       # k rows (f32)
                pl.BlockSpec((D, 3 * hp), lambda i: (0, 0)),   # offsets W (c-major, bf16)
                pl.BlockSpec((D, 3 * hp), lambda i: (0, 0)),   # attn W q-half, x3 (bf16)
                pl.BlockSpec((D, 3 * hp), lambda i: (0, 0)),   # attn W k-half, x3 (bf16)
                pl.BlockSpec((1, 3 * hp), lambda i: (0, 0)),   # offsets bias (f32)
                pl.BlockSpec((1, 3 * hp), lambda i: (0, 0)),   # attn bias, x3 (f32)
                pl.BlockSpec((3, 3 * hp), lambda i: (0, 0)),   # 0/1 selector (bf16)
            ],
            out_specs=pl.BlockSpec((3, tm), lambda i: (0, i)), # lane-dense, transposed
        ),
        compiler_params=pltpu.CompilerParams(
            dimension_semantics=("parallel",),
            vmem_limit_bytes=vmem_limit),
        cost_estimate=pl.CostEstimate(flops=flops, transcendentals=0,
                                      bytes_accessed=bytes_accessed),
    )(qf, kf, ws, waq3, wak3, bs, ba3, selt)

    return out_t.T.reshape(B, L, 3)


def make_params(key, d_model, n_head, n_point):
    """PyTorch-compatible init + repacking into the kernel layout.

    nn.Linear(d_model, H*P*3):   weight (H*P*3, d_model), bias (H*P*3,)
    nn.Linear(2*d_model, H*P):   weight (H*P, 2*d_model), bias (H*P,)
    Uses PyTorch-style uniform(-1/sqrt(fan_in), 1/sqrt(fan_in)).
    """
    hp = n_head * n_point
    k1, k2, k3, k4 = jax.random.split(key, 4)

    lim_s = 1.0 / np.sqrt(d_model)
    w_s = jax.random.uniform(k1, (hp * 3, d_model), jnp.float32, -lim_s, lim_s)
    b_s = jax.random.uniform(k2, (hp * 3,), jnp.float32, -lim_s, lim_s)

    lim_a = 1.0 / np.sqrt(2 * d_model)
    w_a = jax.random.uniform(k3, (hp, 2 * d_model), jnp.float32, -lim_a, lim_a)
    b_a = jax.random.uniform(k4, (hp,), jnp.float32, -lim_a, lim_a)

    # sampling_offsets: torch output index (h*P+p)*3 + c  ->  c*H*P + (h*P+p)
    ws_c = jnp.transpose(w_s.reshape(hp, 3, d_model), (1, 0, 2)).reshape(3 * hp, d_model).T
    bs_c = jnp.transpose(b_s.reshape(hp, 3), (1, 0)).reshape(1, 3 * hp)

    # attention_weights, split over the cat([q, k]) feature axis, and replicated
    # across the 3 offset-channel blocks so the MXU broadcasts attn over channels
    # (removes the in-kernel concat([a,a,a]) and the lane slice at 3*HP).
    waq = w_a[:, :d_model].T                                   # (D, HP)
    wak = w_a[:, d_model:].T                                   # (D, HP)
    waq3 = jnp.tile(waq, (1, 3)).astype(jnp.bfloat16)          # (D, 3*HP)
    wak3 = jnp.tile(wak, (1, 3)).astype(jnp.bfloat16)          # (D, 3*HP)
    ba3 = jnp.tile(b_a.reshape(1, hp), (1, 3)).astype(jnp.float32)

    ws = ws_c.astype(jnp.bfloat16)                             # (D, 3*HP)
    bs = bs_c.astype(jnp.float32)                              # (1, 3*HP)

    # Unscaled 0/1 block-diagonal channel selector, bf16 (exactly representable);
    # the 1/n_head head-mean is applied to the f32 result inside the kernel.
    selt = jnp.repeat(jnp.eye(3, dtype=jnp.bfloat16), hp, axis=1)   # (3, 3*HP)

    packed = (ws, waq3, wak3, bs, ba3, selt)
    raw = (w_s, b_s, w_a, b_a)
    return packed, raw


def reference_forward(q, k, raw_params, n_head, n_point):
    """Pure-JAX f32 replica of the PyTorch forward."""
    w_s, b_s, w_a, b_a = raw_params
    B, L, D = q.shape
    v = jnp.concatenate([q, k], axis=-1)
    offsets = (q @ w_s.T + b_s).reshape(B, L, n_head, n_point, 3)
    attn = (v @ w_a.T + b_a).reshape(B, L, n_head, n_point, 1)
    flow = jnp.squeeze(jnp.matmul(jnp.swapaxes(offsets, 3, 4), attn), axis=-1)
    return jnp.mean(flow, axis=-2)     # (B, L, 3)


def reference_forward_bf16(q, k, raw_params, n_head, n_point):
    """Same math with the kernel's bf16-operand / f32-accumulate quantization."""
    w_s, b_s, w_a, b_a = raw_params
    B, L, D = q.shape
    hp = n_head * n_point
    qb = q.astype(jnp.bfloat16).reshape(-1, D)
    kb = k.astype(jnp.bfloat16).reshape(-1, D)
    offs = (jnp.dot(qb, w_s.astype(jnp.bfloat16).T,
                    preferred_element_type=jnp.float32)
            + b_s).reshape(-1, hp, 3)
    attn = (jnp.dot(qb, w_a[:, :D].astype(jnp.bfloat16).T,
                    preferred_element_type=jnp.float32)
            + jnp.dot(kb, w_a[:, D:].astype(jnp.bfloat16).T,
                      preferred_element_type=jnp.float32)
            + b_a).reshape(-1, hp, 1)
    prod = (offs * attn).astype(jnp.bfloat16).astype(jnp.float32)
    flow = jnp.sum(prod, axis=1) / n_head
    return flow.reshape(B, L, 3)


if __name__ == "__main__":
    # Small shapes consistent with the module.
    B, L, d_model = 2, 8, 32
    n_head, n_point = 4, 4

    key = jax.random.PRNGKey(0)
    kq, kk, kp = jax.random.split(key, 3)
    enc_input = jax.random.normal(kq, (B, L, d_model), jnp.float32)
    enc_input1 = jax.random.normal(kk, (B, L, d_model), jnp.float32)

    packed_params, raw_params = make_params(kp, d_model, n_head, n_point)

    out = deformer_layer_pallas(enc_input, enc_input1, packed_params,
                                n_head=n_head, n_point=n_point)
    out = jax.block_until_ready(out)

    # Tight check against a reference with the same bf16 quantization.
    ref_bf16 = reference_forward_bf16(enc_input, enc_input1, raw_params, n_head, n_point)
    np.testing.assert_allclose(np.asarray(out), np.asarray(ref_bf16),
                               rtol=1e-2, atol=1e-2)

    # Looser check against the full-f32 PyTorch-equivalent reference.
    ref_f32 = reference_forward(enc_input, enc_input1, raw_params, n_head, n_point)
    np.testing.assert_allclose(np.asarray(out), np.asarray(ref_f32),
                               rtol=5e-2, atol=5e-2)

    print("KERNEL_OK")
</pallas_src>

<mosaic_0001>
module attributes {stable_mosaic.version = 11 : i64} {
  func.func @_deformer_kernel(%arg0: i32, %arg1: memref<128x32xf32, #tpu.memory_space<vmem>>, %arg2: memref<128x32xf32, #tpu.memory_space<vmem>>, %arg3: memref<32x48xbf16, #tpu.memory_space<vmem>>, %arg4: memref<32x48xbf16, #tpu.memory_space<vmem>>, %arg5: memref<32x48xbf16, #tpu.memory_space<vmem>>, %arg6: memref<1x48xf32, #tpu.memory_space<vmem>>, %arg7: memref<1x48xf32, #tpu.memory_space<vmem>>, %arg8: memref<3x48xbf16, #tpu.memory_space<vmem>>, %arg9: memref<3x128xf32, #tpu.memory_space<vmem>>) attributes {dimension_semantics = [#tpu.dimension_semantics<parallel>], iteration_bounds = array<i64: 1>, scalar_prefetch = 0 : i64, scratch_operands = 0 : i64, tpu.core_type = #tpu.core_type<tc>, window_params = [{transform_indices = @transform_0, window_bounds = array<i64: 128, 32>}, {transform_indices = @transform_1, window_bounds = array<i64: 128, 32>}, {pipeline_mode = #tpu.pipeline_mode<synchronous>, transform_indices = @transform_2, window_bounds = array<i64: 32, 48>}, {pipeline_mode = #tpu.pipeline_mode<synchronous>, transform_indices = @transform_3, window_bounds = array<i64: 32, 48>}, {pipeline_mode = #tpu.pipeline_mode<synchronous>, transform_indices = @transform_4, window_bounds = array<i64: 32, 48>}, {pipeline_mode = #tpu.pipeline_mode<synchronous>, transform_indices = @transform_5, window_bounds = array<i64: 1, 48>}, {pipeline_mode = #tpu.pipeline_mode<synchronous>, transform_indices = @transform_6, window_bounds = array<i64: 1, 48>}, {pipeline_mode = #tpu.pipeline_mode<synchronous>, transform_indices = @transform_7, window_bounds = array<i64: 3, 48>}, {transform_indices = @transform_8, window_bounds = array<i64: 3, 128>}]} {
    %c0 = arith.constant 0 : index
    %c0_0 = arith.constant 0 : index
    %0 = vector.load %arg1[%c0, %c0_0] : memref<128x32xf32, #tpu.memory_space<vmem>>, vector<128x32xf32>
    %1 = arith.truncf %0 : vector<128x32xf32> to vector<128x32xbf16>
    %c0_1 = arith.constant 0 : index
    %c0_2 = arith.constant 0 : index
    %2 = vector.load %arg2[%c0_1, %c0_2] : memref<128x32xf32, #tpu.memory_space<vmem>>, vector<128x32xf32>
    %3 = arith.truncf %2 : vector<128x32xf32> to vector<128x32xbf16>
    %c0_3 = arith.constant 0 : index
    %c0_4 = arith.constant 0 : index
    %4 = vector.load %arg3[%c0_3, %c0_4] : memref<32x48xbf16, #tpu.memory_space<vmem>>, vector<32x48xbf16>
    %cst = arith.constant dense<0.000000e+00> : vector<128x48xf32>
    %5 = tpu.matmul %1, %4, %cst {dimension_numbers = #tpu.dot_dimension_numbers<[1], [0], [0], [1], [0, 0, 1, 1], [], []>} : vector<128x32xbf16>, vector<32x48xbf16>, vector<128x48xf32> -> vector<128x48xf32>
    %c0_5 = arith.constant 0 : index
    %c0_6 = arith.constant 0 : index
    %6 = vector.load %arg6[%c0_5, %c0_6] : memref<1x48xf32, #tpu.memory_space<vmem>>, vector<1x48xf32>
    %7 = vector.broadcast %6 : vector<1x48xf32> to vector<128x48xf32>
    %8 = arith.addf %5, %7 : vector<128x48xf32>
    %c0_7 = arith.constant 0 : index
    %c0_8 = arith.constant 0 : index
    %9 = vector.load %arg4[%c0_7, %c0_8] : memref<32x48xbf16, #tpu.memory_space<vmem>>, vector<32x48xbf16>
    %cst_9 = arith.constant dense<0.000000e+00> : vector<128x48xf32>
    %10 = tpu.matmul %1, %9, %cst_9 {dimension_numbers = #tpu.dot_dimension_numbers<[1], [0], [0], [1], [0, 0, 1, 1], [], []>} : vector<128x32xbf16>, vector<32x48xbf16>, vector<128x48xf32> -> vector<128x48xf32>
    %c0_10 = arith.constant 0 : index
    %c0_11 = arith.constant 0 : index
    %11 = vector.load %arg5[%c0_10, %c0_11] : memref<32x48xbf16, #tpu.memory_space<vmem>>, vector<32x48xbf16>
    %cst_12 = arith.constant dense<0.000000e+00> : vector<128x48xf32>
    %12 = tpu.matmul %3, %11, %cst_12 {dimension_numbers = #tpu.dot_dimension_numbers<[1], [0], [0], [1], [0, 0, 1, 1], [], []>} : vector<128x32xbf16>, vector<32x48xbf16>, vector<128x48xf32> -> vector<128x48xf32>
    %13 = arith.addf %10, %12 : vector<128x48xf32>
    %c0_13 = arith.constant 0 : index
    %c0_14 = arith.constant 0 : index
    %14 = vector.load %arg7[%c0_13, %c0_14] : memref<1x48xf32, #tpu.memory_space<vmem>>, vector<1x48xf32>
    %15 = vector.broadcast %14 : vector<1x48xf32> to vector<128x48xf32>
    %16 = arith.addf %13, %15 : vector<128x48xf32>
    %17 = arith.mulf %8, %16 : vector<128x48xf32>
    %18 = arith.truncf %17 : vector<128x48xf32> to vector<128x48xbf16>
    %c0_15 = arith.constant 0 : index
    %c0_16 = arith.constant 0 : index
    %19 = vector.load %arg8[%c0_15, %c0_16] : memref<3x48xbf16, #tpu.memory_space<vmem>>, vector<3x48xbf16>
    %cst_17 = arith.constant dense<0.000000e+00> : vector<3x128xf32>
    %20 = tpu.matmul %19, %18, %cst_17 {dimension_numbers = #tpu.dot_dimension_numbers<[1], [1], [0], [0], [0, 0, 1, 0], [], []>} : vector<3x48xbf16>, vector<128x48xbf16>, vector<3x128xf32> -> vector<3x128xf32>
    %cst_18 = arith.constant 2.500000e-01 : f32
    %21 = vector.broadcast %cst_18 : f32 to vector<3x128xf32>
    %22 = arith.mulf %20, %21 : vector<3x128xf32>
    %c0_19 = arith.constant 0 : index
    %c0_20 = arith.constant 0 : index
    %23 = vector.load %arg9[%c0_19, %c0_20] : memref<3x128xf32, #tpu.memory_space<vmem>>, vector<3x128xf32>
    tpu.vector_store %arg9[%c0_19, %c0_20], %22 {strides = array<i32>} : memref<3x128xf32, #tpu.memory_space<vmem>>, vector<3x128xf32>,
    return
  }
  func.func @transform_0(%arg0: i32) -> (i32, i32) {
    %c0_i32 = arith.constant 0 : i32
    %c0_i32_0 = arith.constant 0 : i32
    return %arg0, %c0_i32 : i32, i32
  }
  func.func @transform_1(%arg0: i32) -> (i32, i32) {
    %c0_i32 = arith.constant 0 : i32
    %c0_i32_0 = arith.constant 0 : i32
    return %arg0, %c0_i32 : i32, i32
  }
  func.func @transform_2(%arg0: i32) -> (i32, i32) {
    %c0_i32 = arith.constant 0 : i32
    %c0_i32_0 = arith.constant 0 : i32
    %c0_i32_1 = arith.constant 0 : i32
    return %c0_i32, %c0_i32_0 : i32, i32
  }
  func.func @transform_3(%arg0: i32) -> (i32, i32) {
    %c0_i32 = arith.constant 0 : i32
    %c0_i32_0 = arith.constant 0 : i32
    %c0_i32_1 = arith.constant 0 : i32
    return %c0_i32, %c0_i32_0 : i32, i32
  }
  func.func @transform_4(%arg0: i32) -> (i32, i32) {
    %c0_i32 = arith.constant 0 : i32
    %c0_i32_0 = arith.constant 0 : i32
    %c0_i32_1 = arith.constant 0 : i32
    return %c0_i32, %c0_i32_0 : i32, i32
  }
  func.func @transform_5(%arg0: i32) -> (i32, i32) {
    %c0_i32 = arith.constant 0 : i32
    %c0_i32_0 = arith.constant 0 : i32
    %c0_i32_1 = arith.constant 0 : i32
    return %c0_i32, %c0_i32_0 : i32, i32
  }
  func.func @transform_6(%arg0: i32) -> (i32, i32) {
    %c0_i32 = arith.constant 0 : i32
    %c0_i32_0 = arith.constant 0 : i32
    %c0_i32_1 = arith.constant 0 : i32
    return %c0_i32, %c0_i32_0 : i32, i32
  }
  func.func @transform_7(%arg0: i32) -> (i32, i32) {
    %c0_i32 = arith.constant 0 : i32
    %c0_i32_0 = arith.constant 0 : i32
    %c0_i32_1 = arith.constant 0 : i32
    return %c0_i32, %c0_i32_0 : i32, i32
  }
  func.func @transform_8(%arg0: i32) -> (i32, i32) {
    %c0_i32 = arith.constant 0 : i32
    %c0_i32_0 = arith.constant 0 : i32
    return %c0_i32, %arg0 : i32, i32
  }
}

</mosaic_0001>

<llo_original>
// kernel: tpu_custom_call.1
$region0: #{tpu_custom_call.1}
  #allocation0 [shape = 'u32[]', space=smem, size = 0x4, offset = 0x4, fixed_abs, tag = 'smem constant byte address 0x4 - core index']
  #allocation1 [shape = 'u32[72,128]{1,0:T(1,128)}', space=vmem, size = 0x9000, scoped, tag = 'internal scratch']
  %s0 = inlined_call_operand.hbm [shape: f32[16,32], index: 0, kind: input, shape index: {}]
  %s1 = inlined_call_operand.hbm [shape: f32[16,32], index: 1, kind: input, shape index: {}]
  %s2 = inlined_call_operand.hbm [shape: bf16[32,48], index: 2, kind: input, shape index: {}]
  %s3 = inlined_call_operand.hbm [shape: bf16[32,48], index: 3, kind: input, shape index: {}]
  %s4 = inlined_call_operand.hbm [shape: bf16[32,48], index: 4, kind: input, shape index: {}]
  %s5 = inlined_call_operand.vmem [shape: f32[1,48], index: 5, kind: input, shape index: {}]
  %s6 = inlined_call_operand.vmem [shape: f32[1,48], index: 6, kind: input, shape index: {}]
  %s7 = inlined_call_operand.vmem [shape: bf16[3,48], index: 7, kind: input, shape index: {}]
  %s8 = inlined_call_operand.hbm [shape: f32[3,16], index: 8, kind: output, shape index: {}]
  %s9 = sld [smem:[#allocation0]]
  $region62: #{tpu_custom_call.1} parent=0
    _
  %s11 = ssub.s32 1, %s9
  %s12 = scalar_select 0, %s11, %s9
  $region1: #{tpu_custom_call.1} parent=0
    #allocation2 [shape = 'u8[65536]{0}', space=vmem, size = 0x10000, scoped, tag = 'input window, operand 0, single buffered']
    #allocation3 [shape = 's32[1]{0}', space=sflag, size = 0x4, scoped, tag = 'scoped memory for tpu_custom_call.1']
    #allocation4 [shape = 's32[1]{0}', space=sflag, size = 0x4, scoped, tag = 'scoped memory for tpu_custom_call.1']
    #allocation5 [shape = 'u8[65536]{0}', space=vmem, size = 0x10000, scoped, tag = 'input window, operand 1, single buffered']
    #allocation6 [shape = 's32[1]{0}', space=sflag, size = 0x4, scoped, tag = 'scoped memory for tpu_custom_call.1']
    #allocation7 [shape = 'u8[8192]{0}', space=vmem, size = 0x2000, scoped, tag = 'input window, operand 2, single buffered']
    #allocation8 [shape = 'u8[8192]{0}', space=vmem, size = 0x2000, scoped, tag = 'input window, operand 3, single buffered']
    #allocation9 [shape = 's32[1]{0}', space=sflag, size = 0x4, scoped, tag = 'scoped memory for tpu_custom_call.1']
    #allocation10 [shape = 'u8[8192]{0}', space=vmem, size = 0x2000, scoped, tag = 'input window, operand 4, single buffered']
    #allocation11 [shape = 'u8[2048]{0}', space=vmem, size = 0x800, scoped, tag = 'output window, operand 0, single buffered']
    %13 = vsyncpa [#allocation3], 0
    %14 = vsyncpa [#allocation6], 0
    %15 = vsyncpa [#allocation9], 0
    %16 = vsyncpa [#allocation4], 0
    // Predicated region
    $region2: #{tpu_custom_call.1} parent=1 // pred_check
      _
    $region3: #{tpu_custom_call.1} parent=1 // pred_check_branch
      %18 = sbr.rel (0) target = $region5
    $region4: #{tpu_custom_call.1} parent=1 // pred_region
      %20 = vsyncadd [#allocation3], 1792
      %s21 = sshll.u32 %s0, 4
      %s22 = int_to_ptr.hbm [resolvable:$true] %s21
      %s23 = sshll.u32 [#allocation2], 4
      %s24 = int_to_ptr.vmem [resolvable:$true] %s23
      %29 = dma.hbm_to_vmem [thread:$0]  %s22, 256, %s24, [#allocation3], 128, 128, 8
    $region5: #{tpu_custom_call.1} parent=1 // pred_fallthru
      _
    // Predicated region
    $region6: #{tpu_custom_call.1} parent=1 // pred_check
      _
    $region7: #{tpu_custom_call.1} parent=1 // pred_check_branch
      %31 = sbr.rel (0) target = $region9
    $region8: #{tpu_custom_call.1} parent=1 // pred_region
      %33 = vsyncadd [#allocation6], 1792
      %s34 = sshll.u32 %s1, 4
      %s35 = int_to_ptr.hbm [resolvable:$true] %s34
      %s36 = sshll.u32 [#allocation5], 4
      %s37 = int_to_ptr.vmem [resolvable:$true] %s36
      %42 = dma.hbm_to_vmem [thread:$0]  %s35, 256, %s37, [#allocation6], 128, 128, 8
    $region9: #{tpu_custom_call.1} parent=1 // pred_fallthru
      _
    // Predicated region
    $region10: #{tpu_custom_call.1} parent=1 // pred_check
      _
    $region11: #{tpu_custom_call.1} parent=1 // pred_check_branch
      %44 = sbr.rel (0) target = $region13
    $region12: #{tpu_custom_call.1} parent=1 // pred_region
      %46 = vsyncadd [#allocation6], 0
      %s47 = sshll.u32 %s2, 4
      %s48 = int_to_ptr.hbm [resolvable:$true] %s47
      %s49 = sshll.u32 [#allocation7], 4
      %s50 = int_to_ptr.vmem [resolvable:$true] %s49
      %55 = dma.hbm_to_vmem [thread:$0]  %s48, 256, %s50, [#allocation6], 64, 64, 4
    $region13: #{tpu_custom_call.1} parent=1 // pred_fallthru
      _
    // Predicated region
    $region14: #{tpu_custom_call.1} parent=1 // pred_check
      _
    $region15: #{tpu_custom_call.1} parent=1 // pred_check_branch
      %57 = sbr.rel (0) target = $region17
    $region16: #{tpu_custom_call.1} parent=1 // pred_region
      %59 = vsyncadd [#allocation9], 0
      %s60 = sshll.u32 %s3, 4
      %s61 = int_to_ptr.hbm [resolvable:$true] %s60
      %s62 = sshll.u32 [#allocation8], 4
      %s63 = int_to_ptr.vmem [resolvable:$true] %s62
      %68 = dma.hbm_to_vmem [thread:$0]  %s61, 256, %s63, [#allocation9], 64, 64, 4
    $region17: #{tpu_custom_call.1} parent=1 // pred_fallthru
      _
    // Predicated region
    $region18: #{tpu_custom_call.1} parent=1 // pred_check
      _
    $region19: #{tpu_custom_call.1} parent=1 // pred_check_branch
      %70 = sbr.rel (0) target = $region21
    $region20: #{tpu_custom_call.1} parent=1 // pred_region
      %72 = vsyncadd [#allocation9], 0
      %s73 = sshll.u32 %s4, 4
      %s74 = int_to_ptr.hbm [resolvable:$true] %s73
      %s75 = sshll.u32 [#allocation10], 4
      %s76 = int_to_ptr.vmem [resolvable:$true] %s75
      %81 = dma.hbm_to_vmem [thread:$0]  %s74, 256, %s76, [#allocation9], 64, 64, 4
    $region21: #{tpu_custom_call.1} parent=1 // pred_fallthru
      _
    // Predicated region
    $region22: #{tpu_custom_call.1} parent=1 // pred_check
      _
    $region23: #{tpu_custom_call.1} parent=1 // pred_check_branch
      %83 = sbr.rel (0) target = $region25
    $region24: #{tpu_custom_call.1} parent=1 // pred_region
      _
    $region25: #{tpu_custom_call.1} parent=1 // pred_fallthru
      _
    // Predicated region
    $region26: #{tpu_custom_call.1} parent=1 // pred_check
      _
    $region27: #{tpu_custom_call.1} parent=1 // pred_check_branch
      %85 = sbr.rel (0) target = $region29
    $region28: #{tpu_custom_call.1} parent=1 // pred_region
      _
    $region29: #{tpu_custom_call.1} parent=1 // pred_fallthru
      _
    // Predicated region
    $region30: #{tpu_custom_call.1} parent=1 // pred_check
      _
    $region31: #{tpu_custom_call.1} parent=1 // pred_check_branch
      %87 = sbr.rel (0) target = $region33
    $region32: #{tpu_custom_call.1} parent=1 // pred_region
      _
    $region33: #{tpu_custom_call.1} parent=1 // pred_fallthru
      _
    // Predicated region
    $region34: #{tpu_custom_call.1} parent=1 // pred_check
      _
    $region35: #{tpu_custom_call.1} parent=1 // pred_check_branch
      %89 = sbr.rel (0) target = $region37
    $region36: #{tpu_custom_call.1} parent=1 // pred_region
      %91 = dma.done [#allocation3], 2048
    $region37: #{tpu_custom_call.1} parent=1 // pred_fallthru
      _
    // Predicated region
    $region38: #{tpu_custom_call.1} parent=1 // pred_check
      _
    $region39: #{tpu_custom_call.1} parent=1 // pred_check_branch
      %93 = sbr.rel (0) target = $region41
    $region40: #{tpu_custom_call.1} parent=1 // pred_region
      %95 = dma.done [#allocation6], 2048
    $region41: #{tpu_custom_call.1} parent=1 // pred_fallthru
      _
    // Predicated region
    $region42: #{tpu_custom_call.1} parent=1 // pred_check
      _
    $region43: #{tpu_custom_call.1} parent=1 // pred_check_branch
      %97 = sbr.rel (0) target = $region45
    $region44: #{tpu_custom_call.1} parent=1 // pred_region
      %99 = dma.done [#allocation6], 256
    $region45: #{tpu_custom_call.1} parent=1 // pred_fallthru
      _
    // Predicated region
    $region46: #{tpu_custom_call.1} parent=1 // pred_check
      _
    $region47: #{tpu_custom_call.1} parent=1 // pred_check_branch
      %101 = sbr.rel (0) target = $region49
    $region48: #{tpu_custom_call.1} parent=1 // pred_region
      %103 = dma.done [#allocation9], 256
    $region49: #{tpu_custom_call.1} parent=1 // pred_fallthru
      _
    // Predicated region
    $region50: #{tpu_custom_call.1} parent=1 // pred_check
      _
    $region51: #{tpu_custom_call.1} parent=1 // pred_check_branch
      %105 = sbr.rel (0) target = $region53
    $region52: #{tpu_custom_call.1} parent=1 // pred_region
      %107 = dma.done [#allocation9], 256
    $region53: #{tpu_custom_call.1} parent=1 // pred_fallthru
      _
    %v109 = vld [vmem:[#allocation2] sm:$0xff]
    %v110 = vld [vmem:[#allocation2 + $0x8] sm:$0xff]
    %v111 = vld [vmem:[#allocation2 + $0x10] sm:$0xff]
    %v112 = vld [vmem:[#allocation2 + $0x18] sm:$0xff]
    %v113 = vld [vmem:[#allocation2 + $0x20] sm:$0xff]
    %v114 = vld [vmem:[#allocation2 + $0x28] sm:$0xff]
    %v115 = vld [vmem:[#allocation2 + $0x30] sm:$0xff]
    %v116 = vld [vmem:[#allocation2 + $0x38] sm:$0xff]
    %v117 = vld [vmem:[#allocation2 + $0x40] sm:$0xff]
    %v118 = vld [vmem:[#allocation2 + $0x48] sm:$0xff]
    %v119 = vld [vmem:[#allocation2 + $0x50] sm:$0xff]
    %v120 = vld [vmem:[#allocation2 + $0x58] sm:$0xff]
    %v121 = vld [vmem:[#allocation2 + $0x60] sm:$0xff]
    %v122 = vld [vmem:[#allocation2 + $0x68] sm:$0xff]
    %v123 = vld [vmem:[#allocation2 + $0x70] sm:$0xff]
    %v124 = vld [vmem:[#allocation2 + $0x78] sm:$0xff]
    %v125 = vpack.c.bf16 %v110, %v109
    %v126 = vpack.c.bf16 %v112, %v111
    %v127 = vpack.c.bf16 %v114, %v113
    %v128 = vpack.c.bf16 %v116, %v115
    %v129 = vpack.c.bf16 %v118, %v117
    %v130 = vpack.c.bf16 %v120, %v119
    %v131 = vpack.c.bf16 %v122, %v121
    %v132 = vpack.c.bf16 %v124, %v123
    %v133 = vld [vmem:[#allocation5] sm:$0xff]
    %v134 = vld [vmem:[#allocation5 + $0x8] sm:$0xff]
    %v135 = vld [vmem:[#allocation5 + $0x10] sm:$0xff]
    %v136 = vld [vmem:[#allocation5 + $0x18] sm:$0xff]
    %v137 = vld [vmem:[#allocation5 + $0x20] sm:$0xff]
    %v138 = vld [vmem:[#allocation5 + $0x28] sm:$0xff]
    %v139 = vld [vmem:[#allocation5 + $0x30] sm:$0xff]
    %v140 = vld [vmem:[#allocation5 + $0x38] sm:$0xff]
    %v141 = vld [vmem:[#allocation5 + $0x40] sm:$0xff]
    %v142 = vld [vmem:[#allocation5 + $0x48] sm:$0xff]
    %v143 = vld [vmem:[#allocation5 + $0x50] sm:$0xff]
    %v144 = vld [vmem:[#allocation5 + $0x58] sm:$0xff]
    %v145 = vld [vmem:[#allocation5 + $0x60] sm:$0xff]
    %v146 = vld [vmem:[#allocation5 + $0x68] sm:$0xff]
    %v147 = vld [vmem:[#allocation5 + $0x70] sm:$0xff]
    %v148 = vld [vmem:[#allocation5 + $0x78] sm:$0xff]
    %v149 = vpack.c.bf16 %v134, %v133
    %v150 = vpack.c.bf16 %v136, %v135
    %v151 = vpack.c.bf16 %v138, %v137
    %v152 = vpack.c.bf16 %v140, %v139
    %v153 = vpack.c.bf16 %v142, %v141
    %v154 = vpack.c.bf16 %v144, %v143
    %v155 = vpack.c.bf16 %v146, %v145
    %v156 = vpack.c.bf16 %v148, %v147
    %v157 = vld [vmem:[#allocation7] sm:$0xf]
    %v158 = vld [vmem:[#allocation7 + $0x4] sm:$0xf]
    %v159 = vld [vmem:[#allocation7 + $0x8] sm:$0xf]
    %v160 = vld [vmem:[#allocation7 + $0xc] sm:$0xf]
    %v161 = vld [vmem:[%s5] sm:$0x1]
    %v163 = vperm.slane %v161, 0
    %v169 = vunpack.c.l.b16 %v157
    %v170 = vunpack.c.l.b16 %v158
    %v171 = vunpack.c.l.b16 %v159
    %v172 = vunpack.c.l.b16 %v160
    %v173 = vpack.c.b16 %v170, %v169
    %v174 = vpack.c.b16 %v172, %v171
    %vm177 = vcmask 261120
    %v179 = vsel %vm177, %v125, 0
    %v182 = vsel %vm177, %v126, 0
    %v185 = vsel %vm177, %v127, 0
    %v188 = vsel %vm177, %v128, 0
    %v191 = vsel %vm177, %v129, 0
    %v194 = vsel %vm177, %v130, 0
    %v197 = vsel %vm177, %v131, 0
    %v200 = vsel %vm177, %v132, 0
    %202 = vmatpush.bf16.msra.mxu0 0
    %203 = vmatpush.bf16.msra.mxu0 0
    %204 = vmatpush.bf16.msra.mxu0 0
    %205 = vmatpush.bf16.msra.mxu0 0
    %206 = vmatpush.bf16.msra.mxu0 0
    %207 = vmatpush.bf16.msra.mxu0 0
    %208 = vmatpush.bf16.msra.mxu0 %v174
    %209 = vmatpush.bf16.msra.mxu0 %v173
    %210 = vmatmul.bf16.gmra.mxu0 %v179
    %v211 = vpop.f32.mrf.mxu0
    %v212 = vadd.f32 %v163, %v211
    %v213 = vpop.f32.mrf.mxu0
    %v214 = vadd.f32 %v163, %v213
    %215 = vmatmul.bf16.gmra.mxu0 %v182
    %v216 = vpop.f32.mrf.mxu0
    %v217 = vadd.f32 %v163, %v216
    %v218 = vpop.f32.mrf.mxu0
    %v219 = vadd.f32 %v163, %v218
    %220 = vmatmul.bf16.gmra.mxu0 %v185
    %v221 = vpop.f32.mrf.mxu0
    %v222 = vadd.f32 %v163, %v221
    %v223 = vpop.f32.mrf.mxu0
    %v224 = vadd.f32 %v163, %v223
    %225 = vmatmul.bf16.gmra.mxu0 %v188
    %v226 = vpop.f32.mrf.mxu0
    %v227 = vadd.f32 %v163, %v226
    %v228 = vpop.f32.mrf.mxu0
    %v229 = vadd.f32 %v163, %v228
    %230 = vmatmul.bf16.gmra.mxu0 %v191
    %v231 = vpop.f32.mrf.mxu0
    %v232 = vadd.f32 %v163, %v231
    %v233 = vpop.f32.mrf.mxu0
    %v234 = vadd.f32 %v163, %v233
    %235 = vmatmul.bf16.gmra.mxu0 %v194
    %v236 = vpop.f32.mrf.mxu0
    %v237 = vadd.f32 %v163, %v236
    %v238 = vpop.f32.mrf.mxu0
    %v239 = vadd.f32 %v163, %v238
    %240 = vmatmul.bf16.gmra.mxu0 %v197
    %v241 = vpop.f32.mrf.mxu0
    %v242 = vadd.f32 %v163, %v241
    %v243 = vpop.f32.mrf.mxu0
    %v244 = vadd.f32 %v163, %v243
    %245 = vmatmul.bf16.gmra.mxu0 %v200
    %v246 = vpop.f32.mrf.mxu0
    %v247 = vadd.f32 %v163, %v246
    %v248 = vpop.f32.mrf.mxu0
    %v249 = vadd.f32 %v163, %v248
    %250 = vdwg.mxu0
    %v251 = vld [vmem:[#allocation8] sm:$0xf]
    %v252 = vld [vmem:[#allocation8 + $0x4] sm:$0xf]
    %v253 = vld [vmem:[#allocation8 + $0x8] sm:$0xf]
    %v254 = vld [vmem:[#allocation8 + $0xc] sm:$0xf]
    %v255 = vld [vmem:[#allocation10] sm:$0xf]
    %v256 = vld [vmem:[#allocation10 + $0x4] sm:$0xf]
    %v257 = vld [vmem:[#allocation10 + $0x8] sm:$0xf]
    %v258 = vld [vmem:[#allocation10 + $0xc] sm:$0xf]
    %v263 = vunpack.c.l.b16 %v255
    %v264 = vunpack.c.l.b16 %v256
    %v265 = vunpack.c.l.b16 %v257
    %v266 = vunpack.c.l.b16 %v258
    %v267 = vpack.c.b16 %v264, %v263
    %v268 = vpack.c.b16 %v266, %v265
    %v272 = vsel %vm177, %v149, 0
    %v275 = vsel %vm177, %v150, 0
    %v278 = vsel %vm177, %v151, 0
    %v281 = vsel %vm177, %v152, 0
    %v284 = vsel %vm177, %v153, 0
    %v287 = vsel %vm177, %v154, 0
    %v290 = vsel %vm177, %v155, 0
    %v293 = vsel %vm177, %v156, 0
    %295 = vmatpush.bf16.msra.mxu0 0
    %296 = vmatpush.bf16.msra.mxu0 0
    %297 = vmatpush.bf16.msra.mxu0 0
    %298 = vmatpush.bf16.msra.mxu0 0
    %299 = vmatpush.bf16.msra.mxu0 0
    %300 = vmatpush.bf16.msra.mxu0 0
    %301 = vmatpush.bf16.msra.mxu0 %v268
    %302 = vmatpush.bf16.msra.mxu0 %v267
    %303 = vmatmul.bf16.gmra.mxu0 %v272
    %v304 = vpop.f32.mrf.mxu0
    %v305 = vadd.f32 0.0, %v304
    %v306 = vpop.f32.mrf.mxu0
    %v307 = vadd.f32 0.0, %v306
    %308 = vmatmul.bf16.gmra.mxu0 %v275
    %v309 = vpop.f32.mrf.mxu0
    %v310 = vadd.f32 0.0, %v309
    %v311 = vpop.f32.mrf.mxu0
    %v312 = vadd.f32 0.0, %v311
    %313 = vmatmul.bf16.gmra.mxu0 %v278
    %v314 = vpop.f32.mrf.mxu0
    %v315 = vadd.f32 0.0, %v314
    %v316 = vpop.f32.mrf.mxu0
    %v317 = vadd.f32 0.0, %v316
    %318 = vmatmul.bf16.gmra.mxu0 %v281
    %v319 = vpop.f32.mrf.mxu0
    %v320 = vadd.f32 0.0, %v319
    %v321 = vpop.f32.mrf.mxu0
    %v322 = vadd.f32 0.0, %v321
    %323 = vmatmul.bf16.gmra.mxu0 %v284
    %v324 = vpop.f32.mrf.mxu0
    %v325 = vadd.f32 0.0, %v324
    %v326 = vpop.f32.mrf.mxu0
    %v327 = vadd.f32 0.0, %v326
    %328 = vmatmul.bf16.gmra.mxu0 %v287
    %v329 = vpop.f32.mrf.mxu0
    %v330 = vadd.f32 0.0, %v329
    %v331 = vpop.f32.mrf.mxu0
    %v332 = vadd.f32 0.0, %v331
    %333 = vmatmul.bf16.gmra.mxu0 %v290
    %v334 = vpop.f32.mrf.mxu0
    %v335 = vadd.f32 0.0, %v334
    %v336 = vpop.f32.mrf.mxu0
    %v337 = vadd.f32 0.0, %v336
    %338 = vmatmul.bf16.gmra.mxu0 %v293
    %v339 = vpop.f32.mrf.mxu0
    %v340 = vadd.f32 0.0, %v339
    %v341 = vpop.f32.mrf.mxu0
    %v342 = vadd.f32 0.0, %v341
    %343 = vdwg.mxu0
    %v348 = vunpack.c.l.b16 %v251
    %v349 = vunpack.c.l.b16 %v252
    %v350 = vunpack.c.l.b16 %v253
    %v351 = vunpack.c.l.b16 %v254
    %v352 = vpack.c.b16 %v349, %v348
    %v353 = vpack.c.b16 %v351, %v350
    %356 = vmatpush.bf16.msra.mxu0 0
    %357 = vmatpush.bf16.msra.mxu0 0
    %358 = vmatpush.bf16.msra.mxu0 0
    %359 = vmatpush.bf16.msra.mxu0 0
    %360 = vmatpush.bf16.msra.mxu0 0
    %361 = vmatpush.bf16.msra.mxu0 0
    %362 = vmatpush.bf16.msra.mxu0 %v353
    %363 = vmatpush.bf16.msra.mxu0 %v352
    %364 = vmatmul.bf16.gmra.mxu0 %v179
    %v365 = vpop.f32.mrf.mxu0
    %v366 = vadd.f32 %v305, %v365
    %v367 = vpop.f32.mrf.mxu0
    %v368 = vadd.f32 %v307, %v367
    %369 = vmatmul.bf16.gmra.mxu0 %v182
    %v370 = vpop.f32.mrf.mxu0
    %v371 = vadd.f32 %v310, %v370
    %v372 = vpop.f32.mrf.mxu0
    %v373 = vadd.f32 %v312, %v372
    %374 = vmatmul.bf16.gmra.mxu0 %v185
    %v375 = vpop.f32.mrf.mxu0
    %v376 = vadd.f32 %v315, %v375
    %v377 = vpop.f32.mrf.mxu0
    %v378 = vadd.f32 %v317, %v377
    %379 = vmatmul.bf16.gmra.mxu0 %v188
    %v380 = vpop.f32.mrf.mxu0
    %v381 = vadd.f32 %v320, %v380
    %v382 = vpop.f32.mrf.mxu0
    %v383 = vadd.f32 %v322, %v382
    %384 = vmatmul.bf16.gmra.mxu0 %v191
    %v385 = vpop.f32.mrf.mxu0
    %v386 = vadd.f32 %v325, %v385
    %v387 = vpop.f32.mrf.mxu0
    %v388 = vadd.f32 %v327, %v387
    %389 = vmatmul.bf16.gmra.mxu0 %v194
    %v390 = vpop.f32.mrf.mxu0
    %v391 = vadd.f32 %v330, %v390
    %v392 = vpop.f32.mrf.mxu0
    %v393 = vadd.f32 %v332, %v392
    %394 = vmatmul.bf16.gmra.mxu0 %v197
    %v395 = vpop.f32.mrf.mxu0
    %v396 = vadd.f32 %v335, %v395
    %v397 = vpop.f32.mrf.mxu0
    %v398 = vadd.f32 %v337, %v397
    %399 = vmatmul.bf16.gmra.mxu0 %v200
    %v400 = vpop.f32.mrf.mxu0
    %v401 = vadd.f32 %v340, %v400
    %v402 = vpop.f32.mrf.mxu0
    %v403 = vadd.f32 %v342, %v402
    %404 = vdwg.mxu0
    %v405 = vld [vmem:[%s6] sm:$0x1]
    %v407 = vperm.slane %v405, 0
    %v409 = vadd.f32 %v366, %v407
    %v410 = vadd.f32 %v368, %v407
    %v411 = vadd.f32 %v371, %v407
    %v412 = vadd.f32 %v373, %v407
    %v413 = vadd.f32 %v376, %v407
    %v414 = vadd.f32 %v378, %v407
    %v415 = vadd.f32 %v381, %v407
    %v416 = vadd.f32 %v383, %v407
    %v417 = vadd.f32 %v386, %v407
    %v418 = vadd.f32 %v388, %v407
    %v419 = vadd.f32 %v391, %v407
    %v420 = vadd.f32 %v393, %v407
    %v421 = vadd.f32 %v396, %v407
    %v422 = vadd.f32 %v398, %v407
    %v423 = vadd.f32 %v401, %v407
    %v424 = vadd.f32 %v403, %v407
    %v425 = vmul.f32 %v212, %v409
    %v426 = vmul.f32 %v214, %v410
    %v427 = vmul.f32 %v217, %v411
    %v428 = vmul.f32 %v219, %v412
    %v429 = vmul.f32 %v222, %v413
    %v430 = vmul.f32 %v224, %v414
    %v431 = vmul.f32 %v227, %v415
    %v432 = vmul.f32 %v229, %v416
    %v433 = vmul.f32 %v232, %v417
    %v434 = vmul.f32 %v234, %v418
    %v435 = vmul.f32 %v237, %v419
    %v436 = vmul.f32 %v239, %v420
    %v437 = vmul.f32 %v242, %v421
    %v438 = vmul.f32 %v244, %v422
    %v439 = vmul.f32 %v247, %v423
    %v440 = vmul.f32 %v249, %v424
    %v441 = vpack.c.bf16 %v426, %v425
    %v442 = vpack.c.bf16 %v428, %v427
    %v443 = vpack.c.bf16 %v430, %v429
    %v444 = vpack.c.bf16 %v432, %v431
    %v445 = vpack.c.bf16 %v434, %v433
    %v446 = vpack.c.bf16 %v436, %v435
    %v447 = vpack.c.bf16 %v438, %v437
    %v448 = vpack.c.bf16 %v440, %v439
    %v449 = vld [vmem:[%s7] sm:$0x3]
    %vm450 = vcmask 392192
    %v452 = vsel %vm450, %v449, 0
    %v455 = vsel %vm450, %v441, 0
    %v458 = vsel %vm450, %v442, 0
    %v461 = vsel %vm450, %v443, 0
    %v464 = vsel %vm450, %v444, 0
    %v467 = vsel %vm450, %v445, 0
    %v470 = vsel %vm450, %v446, 0
    %v473 = vsel %vm450, %v447, 0
    %v476 = vsel %vm450, %v448, 0
    %478 = vmatpush.bf16.xpose.msra.mxu0 %v476
    %479 = vmatpush.bf16.xpose.msra.mxu0 %v473
    %480 = vmatpush.bf16.xpose.msra.mxu0 %v470
    %481 = vmatpush.bf16.xpose.msra.mxu0 %v467
    %482 = vmatpush.bf16.xpose.msra.mxu0 %v464
    %483 = vmatpush.bf16.xpose.msra.mxu0 %v461
    %484 = vmatpush.bf16.xpose.msra.mxu0 %v458
    %485 = vmatpush.bf16.xpose.msra.mxu0 %v455
    %486 = vmatmul.bf16.gmra.mxu0 %v452
    %v487 = vpop.f32.mrf.mxu0
    %v488 = vadd.f32 0.0, %v487
    %v489 = vpop.f32.mrf.mxu0
    %490 = vdwg.mxu0
    %v491 = vmul.f32 %v488, 0.25
    %492 = vst [vmem:[#allocation11] sm:$0x7] %v491
    // Predicated region
    $region54: #{tpu_custom_call.1} parent=1 // pred_check
      _
    $region55: #{tpu_custom_call.1} parent=1 // pred_check_branch
      %494 = sbr.rel (0) target = $region57
    $region56: #{tpu_custom_call.1} parent=1 // pred_region
      %496 = vsyncadd [#allocation4], 0
      %s498 = sshll.u32 [#allocation11], 4
      %s499 = int_to_ptr.vmem [resolvable:$true] %s498
      %s500 = sshll.u32 %s8, 4
      %s501 = int_to_ptr.hbm [resolvable:$true] %s500
      %503 = dma.vmem_to_hbm [thread:$0]  %s499, 64, %s501, [#allocation4]
    $region57: #{tpu_custom_call.1} parent=1 // pred_fallthru
      _
    // Predicated region
    $region58: #{tpu_custom_call.1} parent=1 // pred_check
      _
    $region59: #{tpu_custom_call.1} parent=1 // pred_check_branch
      %505 = sbr.rel (0) target = $region61
    $region60: #{tpu_custom_call.1} parent=1 // pred_region
      %507 = dma.done [#allocation4], 64
    $region61: #{tpu_custom_call.1} parent=1 // pred_fallthru
      _
    %508 = vsyncpa [#allocation3], 1
    %509 = vsyncpa [#allocation6], 1
    %510 = vsyncpa [#allocation9], 1
    %511 = vsyncpa [#allocation4], 1

</llo_original>
